<compile_context>
chip_gen: v7x
topology: tpu7x:2x2x1
jax: 0.10.0
libtpu: 0.0.40
codegen_flags: <defaults>
</compile_context>

<pallas_src>
import jax
import jax.numpy as jnp
from jax.experimental import pallas as pl
from jax.experimental.pallas import tpu as pltpu

EPS = 1e-5
LANE = 128


def _round_up(n, m):
    return ((n + m - 1) // m) * m


def _pick_tile(dim, max_tile=512):
    """Largest convenient tile that divides `dim` (padded dims are 128-multiples)."""
    if dim <= max_tile:
        return dim
    for t in (512, 256, 128):
        if dim % t == 0:
            return t
    return dim  # fall back to a single full block


def _bn_relu(h, gamma, beta):
    """BatchNorm1d (training-mode batch stats) + ReLU, two-pass statistics."""
    inv_n = 1.0 / h.shape[0]
    mean = jnp.sum(h, axis=0, keepdims=True) * inv_n
    d = h - mean
    var = jnp.sum(d * d, axis=0, keepdims=True) * inv_n
    return jnp.maximum(d * jax.lax.rsqrt(var + EPS) * gamma + beta, 0.0)


# ----------------------------- fused kernel --------------------------------


def _fused_projector_kernel(
    x_ref, w1_ref, b1_ref, g1_ref, be1_ref,
    w2_ref, b2_ref, g2_ref, be2_ref,
    w3_ref, b3_ref,
    o_ref,
    h1_ref, acc_ref,
):
    """Grid step j over the hidden-feature axis (= layer-3 reduction axis).

    j == 0          : layer-1 Linear+BN+ReLU (weights resident) -> h1 scratch,
                      layer-3 accumulator initialized with its bias.
    every step      : layer-2 Linear+BN+ReLU on one hidden-feature tile,
                      layer-3 partial matmul accumulated in f32 VMEM.
    j == last       : accumulator stored to the output block.
    """
    j = pl.program_id(0)

    @pl.when(j == 0)
    def _():
        x = x_ref[...].astype(jnp.bfloat16)
        h = jnp.dot(x, w1_ref[...], preferred_element_type=jnp.float32) + b1_ref[...]
        h1_ref[...] = _bn_relu(h, g1_ref[...], be1_ref[...]).astype(jnp.bfloat16)
        # Fold the final-layer bias into the accumulator init.
        acc_ref[...] = jnp.broadcast_to(b3_ref[...], acc_ref.shape)

    # Layer 2 on one feature tile: BN stats are per-feature over the FULL batch,
    # so feature-axis tiling is exact.
    h2 = jnp.dot(h1_ref[...], w2_ref[...], preferred_element_type=jnp.float32)
    h2 = _bn_relu(h2 + b2_ref[...], g2_ref[...], be2_ref[...]).astype(jnp.bfloat16)

    # Layer 3 partial product for this tile of the reduction axis.
    acc_ref[...] += jnp.dot(h2, w3_ref[...], preferred_element_type=jnp.float32)

    @pl.when(j == pl.num_programs(0) - 1)
    def _():
        o_ref[...] = acc_ref[...].astype(o_ref.dtype)


# ----------------------------- wrapper --------------------------------------


def projector_forward(x, params):
    """x: [B, input_dim] float32. Returns [B, output_dim] float32."""
    B, K1 = x.shape
    Hp = params["w1"].shape[1]       # padded hidden width
    Np = params["w3"].shape[1]       # padded output width
    tn = _pick_tile(Hp)
    grid = (Hp // tn,)               # hidden-feature axis == layer-3 K axis

    in_specs = [
        pl.BlockSpec((B, K1), lambda j: (0, 0)),    # x       (resident, one DMA)
        pl.BlockSpec((K1, Hp), lambda j: (0, 0)),   # w1      (resident)
        pl.BlockSpec((1, Hp), lambda j: (0, 0)),    # b1
        pl.BlockSpec((1, Hp), lambda j: (0, 0)),    # gamma1
        pl.BlockSpec((1, Hp), lambda j: (0, 0)),    # beta1
        pl.BlockSpec((Hp, tn), lambda j: (0, j)),   # w2 column tile (streamed)
        pl.BlockSpec((1, tn), lambda j: (0, j)),    # b2 tile
        pl.BlockSpec((1, tn), lambda j: (0, j)),    # gamma2 tile
        pl.BlockSpec((1, tn), lambda j: (0, j)),    # beta2 tile
        pl.BlockSpec((tn, Np), lambda j: (j, 0)),   # w3 row tile (streamed)
        pl.BlockSpec((1, Np), lambda j: (0, 0)),    # b3
    ]
    out_specs = pl.BlockSpec((B, Np), lambda j: (0, 0))

    # Rough VMEM footprint: double-buffered blocks + scratch; clamp so the
    # same config also fits v7x's 64 MiB physical VMEM.
    est = (
        2 * B * K1 * 4 + 2 * K1 * Hp * 2 + 8 * Hp * 4          # x, w1, layer-1 vecs
        + 2 * Hp * tn * 2 + 6 * tn * 4                          # w2 tiles + layer-2 vecs
        + 2 * tn * Np * 2 + 2 * Np * 4                          # w3 tiles + b3
        + 2 * B * Np * 4                                        # output block
        + B * Hp * 2 + B * Np * 4                               # h1 scratch + accumulator
    )
    vmem_limit = int(min(max(2 * est, 32 * 1024 * 1024), 48 * 1024 * 1024))

    out = pl.pallas_call(
        _fused_projector_kernel,
        out_shape=jax.ShapeDtypeStruct((B, Np), jnp.float32),
        grid_spec=pltpu.PrefetchScalarGridSpec(
            num_scalar_prefetch=0,
            grid=grid,
            in_specs=in_specs,
            out_specs=out_specs,
            scratch_shapes=[
                pltpu.VMEM((B, Hp), jnp.bfloat16),  # layer-1 activations (persist)
                pltpu.VMEM((B, Np), jnp.float32),   # layer-3 accumulator
            ],
        ),
        compiler_params=pltpu.CompilerParams(
            # Single grid axis is the layer-3 reduction (accumulator resident)
            # and carries the j==0 prologue -> must be sequential.
            dimension_semantics=("arbitrary",),
            vmem_limit_bytes=vmem_limit,
        ),
    )(
        x,
        params["w1"], params["b1"], params["g1"], params["be1"],
        params["w2"], params["b2"], params["g2"], params["be2"],
        params["w3"], params["b3"],
    )
    return out[:, : params["out_dim"]]


# ----------------------------- params --------------------------------------


def init_params(key, input_dim, output_dim):
    """Deterministic init mirroring the PyTorch parameter shapes.

    Weights are stored [in, out] (transposed vs. PyTorch), cast to bf16, and
    zero-padded so hidden/output feature dims are multiples of 128 lanes
    (zero padding is provably inert through BN/ReLU and the later matmuls).
    """
    hidden = input_dim * 4
    hidden_p = _round_up(hidden, LANE)
    out_p = _round_up(output_dim, LANE)
    ks = jax.random.split(key, 6)

    def lin(kw, kb, fan_in, fan_out, fan_in_p, fan_out_p):
        bound = fan_in ** -0.5
        w = jax.random.uniform(kw, (fan_in, fan_out), jnp.float32, -bound, bound)
        b = jax.random.uniform(kb, (1, fan_out), jnp.float32, -bound, bound)
        w_p = jnp.zeros((fan_in_p, fan_out_p), jnp.float32).at[:fan_in, :fan_out].set(w)
        b_p = jnp.zeros((1, fan_out_p), jnp.float32).at[:, :fan_out].set(b)
        return w_p.astype(jnp.bfloat16), b_p

    w1, b1 = lin(ks[0], ks[1], input_dim, hidden, input_dim, hidden_p)
    w2, b2 = lin(ks[2], ks[3], hidden, hidden, hidden_p, hidden_p)
    w3, b3 = lin(ks[4], ks[5], hidden, output_dim, hidden_p, out_p)

    def bn(n, n_p):
        gamma = jnp.zeros((1, n_p), jnp.float32).at[:, :n].set(1.0)
        beta = jnp.zeros((1, n_p), jnp.float32)
        return gamma, beta

    g1, be1 = bn(hidden, hidden_p)
    g2, be2 = bn(hidden, hidden_p)

    return {
        "w1": w1, "b1": b1, "g1": g1, "be1": be1,
        "w2": w2, "b2": b2, "g2": g2, "be2": be2,
        "w3": w3, "b3": b3,
        "out_dim": output_dim,
    }


# ----------------------------- reference -----------------------------------


def projector_ref(x, p):
    """Pure-JAX reference mirroring the kernel's bf16-operand / f32-accum math."""
    h = x.astype(jnp.bfloat16)
    h = _bn_relu(
        jnp.dot(h, p["w1"], preferred_element_type=jnp.float32) + p["b1"],
        p["g1"], p["be1"],
    ).astype(jnp.bfloat16)
    h = _bn_relu(
        jnp.dot(h, p["w2"], preferred_element_type=jnp.float32) + p["b2"],
        p["g2"], p["be2"],
    ).astype(jnp.bfloat16)
    out = jnp.dot(h, p["w3"], preferred_element_type=jnp.float32) + p["b3"]
    return out[:, : p["out_dim"]]


if __name__ == "__main__":
    # latent_dim_rec chosen as 32 for this synthetic run -> hidden = 128 (lane-aligned).
    # Batch of 128 fills the sublanes / MXU rows. The batch axis is never tiled
    # or padded (BatchNorm correctness invariant).
    INPUT_DIM = 32
    OUTPUT_DIM = 32
    BATCH = 128

    key = jax.random.PRNGKey(0)
    k_x, k_p = jax.random.split(key)
    x = jax.random.normal(k_x, (BATCH, INPUT_DIM), jnp.float32)
    params = init_params(k_p, INPUT_DIM, OUTPUT_DIM)

    out = jax.block_until_ready(projector_forward(x, params))
    ref = projector_ref(x, params)

    assert out.shape == (BATCH, OUTPUT_DIM)
    assert jnp.allclose(out, ref, atol=2e-2, rtol=2e-2), "mismatch vs JAX reference"

    print("KERNEL_OK")
</pallas_src>

<mosaic_0001>
module attributes {stable_mosaic.version = 11 : i64} {
  func.func @_fused_projector_kernel(%arg0: i32, %arg1: memref<128x32xf32, #tpu.memory_space<vmem>>, %arg2: memref<32x128xbf16, #tpu.memory_space<vmem>>, %arg3: memref<1x128xf32, #tpu.memory_space<vmem>>, %arg4: memref<1x128xf32, #tpu.memory_space<vmem>>, %arg5: memref<1x128xf32, #tpu.memory_space<vmem>>, %arg6: memref<128x128xbf16, #tpu.memory_space<vmem>>, %arg7: memref<1x128xf32, #tpu.memory_space<vmem>>, %arg8: memref<1x128xf32, #tpu.memory_space<vmem>>, %arg9: memref<1x128xf32, #tpu.memory_space<vmem>>, %arg10: memref<128x128xbf16, #tpu.memory_space<vmem>>, %arg11: memref<1x128xf32, #tpu.memory_space<vmem>>, %arg12: memref<128x128xf32, #tpu.memory_space<vmem>>, %arg13: memref<128x128xbf16, #tpu.memory_space<vmem>>, %arg14: memref<128x128xf32, #tpu.memory_space<vmem>>) attributes {dimension_semantics = [#tpu.dimension_semantics<arbitrary>], iteration_bounds = array<i64: 1>, scalar_prefetch = 0 : i64, scratch_operands = 2 : i64, tpu.core_type = #tpu.core_type<tc>, window_params = [{pipeline_mode = #tpu.pipeline_mode<synchronous>, transform_indices = @transform_0, window_bounds = array<i64: 128, 32>}, {pipeline_mode = #tpu.pipeline_mode<synchronous>, transform_indices = @transform_1, window_bounds = array<i64: 32, 128>}, {pipeline_mode = #tpu.pipeline_mode<synchronous>, transform_indices = @transform_2, window_bounds = array<i64: 1, 128>}, {pipeline_mode = #tpu.pipeline_mode<synchronous>, transform_indices = @transform_3, window_bounds = array<i64: 1, 128>}, {pipeline_mode = #tpu.pipeline_mode<synchronous>, transform_indices = @transform_4, window_bounds = array<i64: 1, 128>}, {transform_indices = @transform_5, window_bounds = array<i64: 128, 128>}, {transform_indices = @transform_6, window_bounds = array<i64: 1, 128>}, {transform_indices = @transform_7, window_bounds = array<i64: 1, 128>}, {transform_indices = @transform_8, window_bounds = array<i64: 1, 128>}, {transform_indices = @transform_9, window_bounds = array<i64: 128, 128>}, {pipeline_mode = #tpu.pipeline_mode<synchronous>, transform_indices = @transform_10, window_bounds = array<i64: 1, 128>}, {pipeline_mode = #tpu.pipeline_mode<synchronous>, transform_indices = @transform_11, window_bounds = array<i64: 128, 128>}]} {
    %c0_i32 = arith.constant 0 : i32
    %0 = arith.cmpi eq, %arg0, %c0_i32 : i32
    %1 = arith.extui %0 : i1 to i32
    %c0_i32_0 = arith.constant 0 : i32
    %2 = arith.cmpi ne, %1, %c0_i32_0 : i32
    scf.if %2 {
      %c0_25 = arith.constant 0 : index
      %c0_26 = arith.constant 0 : index
      %42 = vector.load %arg1[%c0_25, %c0_26] : memref<128x32xf32, #tpu.memory_space<vmem>>, vector<128x32xf32>
      %43 = arith.truncf %42 : vector<128x32xf32> to vector<128x32xbf16>
      %c0_27 = arith.constant 0 : index
      %c0_28 = arith.constant 0 : index
      %44 = vector.load %arg2[%c0_27, %c0_28] : memref<32x128xbf16, #tpu.memory_space<vmem>>, vector<32x128xbf16>
      %cst_29 = arith.constant dense<0.000000e+00> : vector<128x128xf32>
      %45 = tpu.matmul %43, %44, %cst_29 {dimension_numbers = #tpu.dot_dimension_numbers<[1], [0], [0], [1], [0, 0, 1, 1], [], []>} : vector<128x32xbf16>, vector<32x128xbf16>, vector<128x128xf32> -> vector<128x128xf32>
      %c0_30 = arith.constant 0 : index
      %c0_31 = arith.constant 0 : index
      %46 = vector.load %arg3[%c0_30, %c0_31] : memref<1x128xf32, #tpu.memory_space<vmem>>, vector<1x128xf32>
      %47 = vector.broadcast %46 : vector<1x128xf32> to vector<128x128xf32>
      %48 = arith.addf %45, %47 : vector<128x128xf32>
      %c0_32 = arith.constant 0 : index
      %c0_33 = arith.constant 0 : index
      %49 = vector.load %arg4[%c0_32, %c0_33] : memref<1x128xf32, #tpu.memory_space<vmem>>, vector<1x128xf32>
      %c0_34 = arith.constant 0 : index
      %c0_35 = arith.constant 0 : index
      %50 = vector.load %arg5[%c0_34, %c0_35] : memref<1x128xf32, #tpu.memory_space<vmem>>, vector<1x128xf32>
      %cst_36 = arith.constant dense<0.000000e+00> : vector<128xf32>
      %51 = vector.multi_reduction <add>, %48, %cst_36 [0] : vector<128x128xf32> to vector<128xf32>
      %52 = vector.shape_cast %51 : vector<128xf32> to vector<1x128xf32>
      %cst_37 = arith.constant 7.812500e-03 : f32
      %53 = vector.broadcast %cst_37 : f32 to vector<1x128xf32>
      %54 = arith.mulf %52, %53 : vector<1x128xf32>
      %55 = vector.broadcast %54 : vector<1x128xf32> to vector<128x128xf32>
      %56 = arith.subf %48, %55 : vector<128x128xf32>
      %57 = arith.mulf %56, %56 : vector<128x128xf32>
      %cst_38 = arith.constant dense<0.000000e+00> : vector<128xf32>
      %58 = vector.multi_reduction <add>, %57, %cst_38 [0] : vector<128x128xf32> to vector<128xf32>
      %59 = vector.shape_cast %58 : vector<128xf32> to vector<1x128xf32>
      %cst_39 = arith.constant 7.812500e-03 : f32
      %60 = vector.broadcast %cst_39 : f32 to vector<1x128xf32>
      %61 = arith.mulf %59, %60 : vector<1x128xf32>
      %cst_40 = arith.constant 9.99999974E-6 : f32
      %62 = vector.broadcast %cst_40 : f32 to vector<1x128xf32>
      %63 = arith.addf %61, %62 : vector<1x128xf32>
      %64 = math.rsqrt %63 : vector<1x128xf32>
      %65 = vector.broadcast %64 : vector<1x128xf32> to vector<128x128xf32>
      %66 = arith.mulf %56, %65 : vector<128x128xf32>
      %67 = vector.broadcast %49 : vector<1x128xf32> to vector<128x128xf32>
      %68 = arith.mulf %66, %67 : vector<128x128xf32>
      %69 = vector.broadcast %50 : vector<1x128xf32> to vector<128x128xf32>
      %70 = arith.addf %68, %69 : vector<128x128xf32>
      %cst_41 = arith.constant 0.000000e+00 : f32
      %71 = vector.broadcast %cst_41 : f32 to vector<128x128xf32>
      %72 = arith.maximumf %70, %71 : vector<128x128xf32>
      %73 = arith.truncf %72 : vector<128x128xf32> to vector<128x128xbf16>
      %c0_42 = arith.constant 0 : index
      %c0_43 = arith.constant 0 : index
      %74 = vector.load %arg13[%c0_42, %c0_43] : memref<128x128xbf16, #tpu.memory_space<vmem>>, vector<128x128xbf16>
      tpu.vector_store %arg13[%c0_42, %c0_43], %73 {strides = array<i32>} : memref<128x128xbf16, #tpu.memory_space<vmem>>, vector<128x128xbf16>,
      %c0_44 = arith.constant 0 : index
      %c0_45 = arith.constant 0 : index
      %75 = vector.load %arg11[%c0_44, %c0_45] : memref<1x128xf32, #tpu.memory_space<vmem>>, vector<1x128xf32>
      %76 = vector.shape_cast %75 : vector<1x128xf32> to vector<1x128xf32>
      %77 = vector.broadcast %76 : vector<1x128xf32> to vector<128x128xf32>
      %c0_46 = arith.constant 0 : index
      %c0_47 = arith.constant 0 : index
      %78 = vector.load %arg14[%c0_46, %c0_47] : memref<128x128xf32, #tpu.memory_space<vmem>>, vector<128x128xf32>
      tpu.vector_store %arg14[%c0_46, %c0_47], %77 {strides = array<i32>} : memref<128x128xf32, #tpu.memory_space<vmem>>, vector<128x128xf32>,
    } else {
    }
    %c0 = arith.constant 0 : index
    %c0_1 = arith.constant 0 : index
    %3 = vector.load %arg13[%c0, %c0_1] : memref<128x128xbf16, #tpu.memory_space<vmem>>, vector<128x128xbf16>
    %c0_2 = arith.constant 0 : index
    %c0_3 = arith.constant 0 : index
    %4 = vector.load %arg6[%c0_2, %c0_3] : memref<128x128xbf16, #tpu.memory_space<vmem>>, vector<128x128xbf16>
    %cst = arith.constant dense<0.000000e+00> : vector<128x128xf32>
    %5 = tpu.matmul %3, %4, %cst {dimension_numbers = #tpu.dot_dimension_numbers<[1], [0], [0], [1], [0, 0, 1, 1], [], []>} : vector<128x128xbf16>, vector<128x128xbf16>, vector<128x128xf32> -> vector<128x128xf32>
    %c0_4 = arith.constant 0 : index
    %c0_5 = arith.constant 0 : index
    %6 = vector.load %arg7[%c0_4, %c0_5] : memref<1x128xf32, #tpu.memory_space<vmem>>, vector<1x128xf32>
    %7 = vector.broadcast %6 : vector<1x128xf32> to vector<128x128xf32>
    %8 = arith.addf %5, %7 : vector<128x128xf32>
    %c0_6 = arith.constant 0 : index
    %c0_7 = arith.constant 0 : index
    %9 = vector.load %arg8[%c0_6, %c0_7] : memref<1x128xf32, #tpu.memory_space<vmem>>, vector<1x128xf32>
    %c0_8 = arith.constant 0 : index
    %c0_9 = arith.constant 0 : index
    %10 = vector.load %arg9[%c0_8, %c0_9] : memref<1x128xf32, #tpu.memory_space<vmem>>, vector<1x128xf32>
    %cst_10 = arith.constant dense<0.000000e+00> : vector<128xf32>
    %11 = vector.multi_reduction <add>, %8, %cst_10 [0] : vector<128x128xf32> to vector<128xf32>
    %12 = vector.shape_cast %11 : vector<128xf32> to vector<1x128xf32>
    %cst_11 = arith.constant 7.812500e-03 : f32
    %13 = vector.broadcast %cst_11 : f32 to vector<1x128xf32>
    %14 = arith.mulf %12, %13 : vector<1x128xf32>
    %15 = vector.broadcast %14 : vector<1x128xf32> to vector<128x128xf32>
    %16 = arith.subf %8, %15 : vector<128x128xf32>
    %17 = arith.mulf %16, %16 : vector<128x128xf32>
    %cst_12 = arith.constant dense<0.000000e+00> : vector<128xf32>
    %18 = vector.multi_reduction <add>, %17, %cst_12 [0] : vector<128x128xf32> to vector<128xf32>
    %19 = vector.shape_cast %18 : vector<128xf32> to vector<1x128xf32>
    %cst_13 = arith.constant 7.812500e-03 : f32
    %20 = vector.broadcast %cst_13 : f32 to vector<1x128xf32>
    %21 = arith.mulf %19, %20 : vector<1x128xf32>
    %cst_14 = arith.constant 9.99999974E-6 : f32
    %22 = vector.broadcast %cst_14 : f32 to vector<1x128xf32>
    %23 = arith.addf %21, %22 : vector<1x128xf32>
    %24 = math.rsqrt %23 : vector<1x128xf32>
    %25 = vector.broadcast %24 : vector<1x128xf32> to vector<128x128xf32>
    %26 = arith.mulf %16, %25 : vector<128x128xf32>
    %27 = vector.broadcast %9 : vector<1x128xf32> to vector<128x128xf32>
    %28 = arith.mulf %26, %27 : vector<128x128xf32>
    %29 = vector.broadcast %10 : vector<1x128xf32> to vector<128x128xf32>
    %30 = arith.addf %28, %29 : vector<128x128xf32>
    %cst_15 = arith.constant 0.000000e+00 : f32
    %31 = vector.broadcast %cst_15 : f32 to vector<128x128xf32>
    %32 = arith.maximumf %30, %31 : vector<128x128xf32>
    %33 = arith.truncf %32 : vector<128x128xf32> to vector<128x128xbf16>
    %c0_16 = arith.constant 0 : index
    %c0_17 = arith.constant 0 : index
    %34 = vector.load %arg14[%c0_16, %c0_17] : memref<128x128xf32, #tpu.memory_space<vmem>>, vector<128x128xf32>
    %c0_18 = arith.constant 0 : index
    %c0_19 = arith.constant 0 : index
    %35 = vector.load %arg10[%c0_18, %c0_19] : memref<128x128xbf16, #tpu.memory_space<vmem>>, vector<128x128xbf16>
    %cst_20 = arith.constant dense<0.000000e+00> : vector<128x128xf32>
    %36 = tpu.matmul %33, %35, %cst_20 {dimension_numbers = #tpu.dot_dimension_numbers<[1], [0], [0], [1], [0, 0, 1, 1], [], []>} : vector<128x128xbf16>, vector<128x128xbf16>, vector<128x128xf32> -> vector<128x128xf32>
    %37 = arith.addf %34, %36 : vector<128x128xf32>
    %c0_21 = arith.constant 0 : index
    %c0_22 = arith.constant 0 : index
    %38 = vector.load %arg14[%c0_21, %c0_22] : memref<128x128xf32, #tpu.memory_space<vmem>>, vector<128x128xf32>
    tpu.vector_store %arg14[%c0_21, %c0_22], %37 {strides = array<i32>} : memref<128x128xf32, #tpu.memory_space<vmem>>, vector<128x128xf32>,
    %c0_i32_23 = arith.constant 0 : i32
    %39 = arith.cmpi eq, %arg0, %c0_i32_23 : i32
    %40 = arith.extui %39 : i1 to i32
    %c0_i32_24 = arith.constant 0 : i32
    %41 = arith.cmpi ne, %40, %c0_i32_24 : i32
    scf.if %41 {
      %c0_25 = arith.constant 0 : index
      %c0_26 = arith.constant 0 : index
      %42 = vector.load %arg14[%c0_25, %c0_26] : memref<128x128xf32, #tpu.memory_space<vmem>>, vector<128x128xf32>
      %c0_27 = arith.constant 0 : index
      %c0_28 = arith.constant 0 : index
      %43 = vector.load %arg12[%c0_27, %c0_28] : memref<128x128xf32, #tpu.memory_space<vmem>>, vector<128x128xf32>
      tpu.vector_store %arg12[%c0_27, %c0_28], %42 {strides = array<i32>} : memref<128x128xf32, #tpu.memory_space<vmem>>, vector<128x128xf32>,
    } else {
    }
    return
  }
  func.func @transform_0(%arg0: i32) -> (i32, i32) {
    %c0_i32 = arith.constant 0 : i32
    %c0_i32_0 = arith.constant 0 : i32
    %c0_i32_1 = arith.constant 0 : i32
    return %c0_i32, %c0_i32_0 : i32, i32
  }
  func.func @transform_1(%arg0: i32) -> (i32, i32) {
    %c0_i32 = arith.constant 0 : i32
    %c0_i32_0 = arith.constant 0 : i32
    %c0_i32_1 = arith.constant 0 : i32
    return %c0_i32, %c0_i32_0 : i32, i32
  }
  func.func @transform_2(%arg0: i32) -> (i32, i32) {
    %c0_i32 = arith.constant 0 : i32
    %c0_i32_0 = arith.constant 0 : i32
    %c0_i32_1 = arith.constant 0 : i32
    return %c0_i32, %c0_i32_0 : i32, i32
  }
  func.func @transform_3(%arg0: i32) -> (i32, i32) {
    %c0_i32 = arith.constant 0 : i32
    %c0_i32_0 = arith.constant 0 : i32
    %c0_i32_1 = arith.constant 0 : i32
    return %c0_i32, %c0_i32_0 : i32, i32
  }
  func.func @transform_4(%arg0: i32) -> (i32, i32) {
    %c0_i32 = arith.constant 0 : i32
    %c0_i32_0 = arith.constant 0 : i32
    %c0_i32_1 = arith.constant 0 : i32
    return %c0_i32, %c0_i32_0 : i32, i32
  }
  func.func @transform_5(%arg0: i32) -> (i32, i32) {
    %c0_i32 = arith.constant 0 : i32
    %c0_i32_0 = arith.constant 0 : i32
    return %c0_i32, %arg0 : i32, i32
  }
  func.func @transform_6(%arg0: i32) -> (i32, i32) {
    %c0_i32 = arith.constant 0 : i32
    %c0_i32_0 = arith.constant 0 : i32
    return %c0_i32, %arg0 : i32, i32
  }
  func.func @transform_7(%arg0: i32) -> (i32, i32) {
    %c0_i32 = arith.constant 0 : i32
    %c0_i32_0 = arith.constant 0 : i32
    return %c0_i32, %arg0 : i32, i32
  }
  func.func @transform_8(%arg0: i32) -> (i32, i32) {
    %c0_i32 = arith.constant 0 : i32
    %c0_i32_0 = arith.constant 0 : i32
    return %c0_i32, %arg0 : i32, i32
  }
  func.func @transform_9(%arg0: i32) -> (i32, i32) {
    %c0_i32 = arith.constant 0 : i32
    %c0_i32_0 = arith.constant 0 : i32
    return %arg0, %c0_i32 : i32, i32
  }
  func.func @transform_10(%arg0: i32) -> (i32, i32) {
    %c0_i32 = arith.constant 0 : i32
    %c0_i32_0 = arith.constant 0 : i32
    %c0_i32_1 = arith.constant 0 : i32
    return %c0_i32, %c0_i32_0 : i32, i32
  }
  func.func @transform_11(%arg0: i32) -> (i32, i32) {
    %c0_i32 = arith.constant 0 : i32
    %c0_i32_0 = arith.constant 0 : i32
    %c0_i32_1 = arith.constant 0 : i32
    return %c0_i32, %c0_i32_0 : i32, i32
  }
}

</mosaic_0001>

<llo_original>
// kernel: tpu_custom_call.1
$region0: #{tpu_custom_call.1}
  #allocation0 [shape = 'u32[]', space=smem, size = 0x4, offset = 0x4, fixed_abs, tag = 'smem constant byte address 0x4 - core index']
  #allocation1 [shape = 'u32[144,128]{1,0:T(1,128)}', space=vmem, size = 0x12000, scoped, tag = 'internal scratch']
  #allocation2 [shape = 'bf16[128,128]{1,0:T(16,128)(2,1)}', space=vmem, size = 0x8000, scoped, tag = 'scratch operand']
  #allocation3 [shape = 'f32[128,128]{1,0:T(8,128)}', space=vmem, size = 0x10000, scoped, tag = 'scratch operand']
  %s0 = inlined_call_operand.vmem [shape: f32[128,32], index: 0, kind: input, shape index: {}]
  %s1 = inlined_call_operand.vmem [shape: bf16[32,128], index: 1, kind: input, shape index: {}]
  %s2 = inlined_call_operand.vmem [shape: f32[1,128], index: 2, kind: input, shape index: {}]
  %s3 = inlined_call_operand.vmem [shape: f32[1,128], index: 3, kind: input, shape index: {}]
  %s4 = inlined_call_operand.vmem [shape: f32[1,128], index: 4, kind: input, shape index: {}]
  %s5 = inlined_call_operand.vmem [shape: bf16[128,128], index: 5, kind: input, shape index: {}]
  %s6 = inlined_call_operand.vmem [shape: f32[1,128], index: 6, kind: input, shape index: {}]
  %s7 = inlined_call_operand.vmem [shape: f32[1,128], index: 7, kind: input, shape index: {}]
  %s8 = inlined_call_operand.vmem [shape: f32[1,128], index: 8, kind: input, shape index: {}]
  %s9 = inlined_call_operand.vmem [shape: bf16[128,128], index: 9, kind: input, shape index: {}]
  %s10 = inlined_call_operand.vmem [shape: f32[1,128], index: 10, kind: input, shape index: {}]
  %s11 = inlined_call_operand.hbm [shape: f32[128,128], index: 11, kind: output, shape index: {}]
  %s12 = sld [smem:[#allocation0]]
  $region62: #{tpu_custom_call.1} parent=0
    _
  %s14 = ssub.s32 1, %s12
  %s15 = scalar_select 0, %s14, %s12
  $region1: #{tpu_custom_call.1} parent=0
    #allocation4 [shape = 'u8[65536]{0}', space=vmem, size = 0x10000, scoped, tag = 'output window, operand 0, single buffered']
    #allocation5 [shape = 's32[1]{0}', space=sflag, size = 0x4, scoped, tag = 'scoped memory for tpu_custom_call.1']
    %16 = vsyncpa [#allocation5], 0
    // Predicated region
    $region2: #{tpu_custom_call.1} parent=1 // pred_check
      _
    $region3: #{tpu_custom_call.1} parent=1 // pred_check_branch
      %18 = sbr.rel (0) target = $region5
    $region4: #{tpu_custom_call.1} parent=1 // pred_region
      _
    $region5: #{tpu_custom_call.1} parent=1 // pred_fallthru
      _
    // Predicated region
    $region6: #{tpu_custom_call.1} parent=1 // pred_check
      _
    $region7: #{tpu_custom_call.1} parent=1 // pred_check_branch
      %20 = sbr.rel (0) target = $region9
    $region8: #{tpu_custom_call.1} parent=1 // pred_region
      _
    $region9: #{tpu_custom_call.1} parent=1 // pred_fallthru
      _
    // Predicated region
    $region10: #{tpu_custom_call.1} parent=1 // pred_check
      _
    $region11: #{tpu_custom_call.1} parent=1 // pred_check_branch
      %22 = sbr.rel (0) target = $region13
    $region12: #{tpu_custom_call.1} parent=1 // pred_region
      _
    $region13: #{tpu_custom_call.1} parent=1 // pred_fallthru
      _
    // Predicated region
    $region14: #{tpu_custom_call.1} parent=1 // pred_check
      _
    $region15: #{tpu_custom_call.1} parent=1 // pred_check_branch
      %24 = sbr.rel (0) target = $region17
    $region16: #{tpu_custom_call.1} parent=1 // pred_region
      _
    $region17: #{tpu_custom_call.1} parent=1 // pred_fallthru
      _
    // Predicated region
    $region18: #{tpu_custom_call.1} parent=1 // pred_check
      _
    $region19: #{tpu_custom_call.1} parent=1 // pred_check_branch
      %26 = sbr.rel (0) target = $region21
    $region20: #{tpu_custom_call.1} parent=1 // pred_region
      _
    $region21: #{tpu_custom_call.1} parent=1 // pred_fallthru
      _
    // Predicated region
    $region22: #{tpu_custom_call.1} parent=1 // pred_check
      _
    $region23: #{tpu_custom_call.1} parent=1 // pred_check_branch
      %28 = sbr.rel (0) target = $region25
    $region24: #{tpu_custom_call.1} parent=1 // pred_region
      _
    $region25: #{tpu_custom_call.1} parent=1 // pred_fallthru
      _
    // Predicated region
    $region26: #{tpu_custom_call.1} parent=1 // pred_check
      _
    $region27: #{tpu_custom_call.1} parent=1 // pred_check_branch
      %30 = sbr.rel (0) target = $region29
    $region28: #{tpu_custom_call.1} parent=1 // pred_region
      _
    $region29: #{tpu_custom_call.1} parent=1 // pred_fallthru
      _
    // Predicated region
    $region30: #{tpu_custom_call.1} parent=1 // pred_check
      _
    $region31: #{tpu_custom_call.1} parent=1 // pred_check_branch
      %32 = sbr.rel (0) target = $region33
    $region32: #{tpu_custom_call.1} parent=1 // pred_region
      _
    $region33: #{tpu_custom_call.1} parent=1 // pred_fallthru
      _
    // Predicated region
    $region34: #{tpu_custom_call.1} parent=1 // pred_check
      _
    $region35: #{tpu_custom_call.1} parent=1 // pred_check_branch
      %34 = sbr.rel (0) target = $region37
    $region36: #{tpu_custom_call.1} parent=1 // pred_region
      _
    $region37: #{tpu_custom_call.1} parent=1 // pred_fallthru
      _
    // Predicated region
    $region38: #{tpu_custom_call.1} parent=1 // pred_check
      _
    $region39: #{tpu_custom_call.1} parent=1 // pred_check_branch
      %36 = sbr.rel (0) target = $region41
    $region40: #{tpu_custom_call.1} parent=1 // pred_region
      _
    $region41: #{tpu_custom_call.1} parent=1 // pred_fallthru
      _
    // Predicated region
    $region42: #{tpu_custom_call.1} parent=1 // pred_check
      _
    $region43: #{tpu_custom_call.1} parent=1 // pred_check_branch
      %38 = sbr.rel (0) target = $region45
    $region44: #{tpu_custom_call.1} parent=1 // pred_region
      _
    $region45: #{tpu_custom_call.1} parent=1 // pred_fallthru
      _
    %p40 = scmp.eq.s32.totalorder 0, 0
    // Predicated region
    $region46: #{tpu_custom_call.1} parent=1 // pred_check
      %p41 = pneg %p40
    $region47: #{tpu_custom_call.1} parent=1 // pred_check_branch
      %43 = sbr.rel (%p41) target = $region49
    $region48: #{tpu_custom_call.1} parent=1 // pred_region
      %v44 = vld [vmem:[%s0] sm:$0xff]
      %v45 = vld [vmem:[%s0 + $0x8] sm:$0xff]
      %v46 = vld [vmem:[%s0 + $0x10] sm:$0xff]
      %v47 = vld [vmem:[%s0 + $0x18] sm:$0xff]
      %v48 = vld [vmem:[%s0 + $0x20] sm:$0xff]
      %v49 = vld [vmem:[%s0 + $0x28] sm:$0xff]
      %v50 = vld [vmem:[%s0 + $0x30] sm:$0xff]
      %v51 = vld [vmem:[%s0 + $0x38] sm:$0xff]
      %v52 = vld [vmem:[%s0 + $0x40] sm:$0xff]
      %v53 = vld [vmem:[%s0 + $0x48] sm:$0xff]
      %v54 = vld [vmem:[%s0 + $0x50] sm:$0xff]
      %v55 = vld [vmem:[%s0 + $0x58] sm:$0xff]
      %v56 = vld [vmem:[%s0 + $0x60] sm:$0xff]
      %v57 = vld [vmem:[%s0 + $0x68] sm:$0xff]
      %v58 = vld [vmem:[%s0 + $0x70] sm:$0xff]
      %v59 = vld [vmem:[%s0 + $0x78] sm:$0xff]
      %v60 = vpack.c.bf16 %v45, %v44
      %v61 = vpack.c.bf16 %v47, %v46
      %v62 = vpack.c.bf16 %v49, %v48
      %v63 = vpack.c.bf16 %v51, %v50
      %v64 = vpack.c.bf16 %v53, %v52
      %v65 = vpack.c.bf16 %v55, %v54
      %v66 = vpack.c.bf16 %v57, %v56
      %v67 = vpack.c.bf16 %v59, %v58
      %v68 = vld [vmem:[%s1] sm:$0xf]
      %v69 = vld [vmem:[%s1 + $0x4] sm:$0xf]
      %v70 = vld [vmem:[%s1 + $0x8] sm:$0xf]
      %v71 = vld [vmem:[%s1 + $0xc] sm:$0xf]
      %v72 = vld [vmem:[%s2] sm:$0x1]
      %v74 = vlaneseq
      %v75 = vshrl.u32 %v74, 7
      %v76 = vsub.s32 0, %v75
      %v77 = vrot.slane %v72, %v76
      %v83 = vunpack.c.l.b16 %v68
      %v84 = vunpack.c.l.b16 %v69
      %v85 = vunpack.c.l.b16 %v70
      %v86 = vunpack.c.l.b16 %v71
      %v87 = vpack.c.b16 %v84, %v83
      %v88 = vpack.c.b16 %v86, %v85
      %vm91 = vcmask 261120
      %v93 = vsel %vm91, %v60, 0
      %v96 = vsel %vm91, %v61, 0
      %v99 = vsel %vm91, %v62, 0
      %v102 = vsel %vm91, %v63, 0
      %v105 = vsel %vm91, %v64, 0
      %v108 = vsel %vm91, %v65, 0
      %v111 = vsel %vm91, %v66, 0
      %v114 = vsel %vm91, %v67, 0
      %116 = vmatprep.subr.bf16.mxu0 0
      %117 = vmatpush1.bf16.msra.mxu0 %v87
      %118 = vmatprep.subr.bf16.mxu0 0
      %119 = vmatpush1.bf16.msra.mxu0 %v88
      %120 = vmatprep.subr.bf16.mxu0 0
      %121 = vmatpush1.bf16.msra.mxu0 0
      %122 = vmatprep.subr.bf16.mxu0 0
      %123 = vmatpush1.bf16.msra.mxu0 0
      %124 = vmatprep.subr.bf16.mxu0 0
      %125 = vmatpush1.bf16.msra.mxu0 0
      %126 = vmatprep.subr.bf16.mxu0 0
      %127 = vmatpush1.bf16.msra.mxu0 0
      %128 = vmatprep.subr.bf16.mxu0 0
      %129 = vmatpush1.bf16.msra.mxu0 0
      %130 = vmatprep.subr.bf16.mxu0 0
      %131 = vmatpush1.bf16.msra.mxu0 0
      %132 = vmatprep.subr.bf16.mxu0 0
      %133 = vmatpush1.bf16.msra.mxu0 0
      %134 = vmatprep.subr.bf16.mxu0 0
      %135 = vmatpush1.bf16.msra.mxu0 0
      %136 = vmatprep.subr.bf16.mxu0 0
      %137 = vmatpush1.bf16.msra.mxu0 0
      %138 = vmatprep.subr.bf16.mxu0 0
      %139 = vmatpush1.bf16.msra.mxu0 0
      %140 = vmatprep.subr.bf16.mxu0 0
      %141 = vmatpush1.bf16.msra.mxu0 0
      %142 = vmatprep.subr.bf16.mxu0 0
      %143 = vmatpush1.bf16.msra.mxu0 0
      %144 = vmatprep.subr.bf16.mxu0 0
      %145 = vmatpush1.bf16.msra.mxu0 0
      %146 = vmatprep.subr.bf16.mxu0 0
      %147 = vmatpush1.bf16.msra.mxu0 0
      %148 = vmatprep.mubr.bf16.mxu0 0
      %149 = vmatmul.mubr.bf16.gmra.mrb[0].mxu0 %v93
      %v150 = vpop.f32.mrb[0].mxu0
      %v151 = vadd.f32 %v77, %v150
      %v152 = vpop.f32.mrb[0].mxu0
      %v153 = vpop.f32.mrb[0].mxu0
      %v154 = vadd.f32 %v77, %v153
      %v155 = vpop.f32.mrb[0].mxu0
      %156 = vmatprep.mubr.bf16.mxu0 0
      %157 = vmatmul.mubr.bf16.gmra.mrb[0].mxu0 %v96
      %v158 = vpop.f32.mrb[0].mxu0
      %v159 = vadd.f32 %v77, %v158
      %v160 = vpop.f32.mrb[0].mxu0
      %v161 = vpop.f32.mrb[0].mxu0
      %v162 = vadd.f32 %v77, %v161
      %v163 = vpop.f32.mrb[0].mxu0
      %164 = vmatprep.mubr.bf16.mxu0 0
      %165 = vmatmul.mubr.bf16.gmra.mrb[0].mxu0 %v99
      %v166 = vpop.f32.mrb[0].mxu0
      %v167 = vadd.f32 %v77, %v166
      %v168 = vpop.f32.mrb[0].mxu0
      %v169 = vpop.f32.mrb[0].mxu0
      %v170 = vadd.f32 %v77, %v169
      %v171 = vpop.f32.mrb[0].mxu0
      %172 = vmatprep.mubr.bf16.mxu0 0
      %173 = vmatmul.mubr.bf16.gmra.mrb[0].mxu0 %v102
      %v174 = vpop.f32.mrb[0].mxu0
      %v175 = vadd.f32 %v77, %v174
      %v176 = vpop.f32.mrb[0].mxu0
      %v177 = vpop.f32.mrb[0].mxu0
      %v178 = vadd.f32 %v77, %v177
      %v179 = vpop.f32.mrb[0].mxu0
      %180 = vmatprep.mubr.bf16.mxu0 0
      %181 = vmatmul.mubr.bf16.gmra.mrb[0].mxu0 %v105
      %v182 = vpop.f32.mrb[0].mxu0
      %v183 = vadd.f32 %v77, %v182
      %v184 = vpop.f32.mrb[0].mxu0
      %v185 = vpop.f32.mrb[0].mxu0
      %v186 = vadd.f32 %v77, %v185
      %v187 = vpop.f32.mrb[0].mxu0
      %188 = vmatprep.mubr.bf16.mxu0 0
      %189 = vmatmul.mubr.bf16.gmra.mrb[0].mxu0 %v108
      %v190 = vpop.f32.mrb[0].mxu0
      %v191 = vadd.f32 %v77, %v190
      %v192 = vpop.f32.mrb[0].mxu0
      %v193 = vpop.f32.mrb[0].mxu0
      %v194 = vadd.f32 %v77, %v193
      %v195 = vpop.f32.mrb[0].mxu0
      %196 = vmatprep.mubr.bf16.mxu0 0
      %197 = vmatmul.mubr.bf16.gmra.mrb[0].mxu0 %v111
      %v198 = vpop.f32.mrb[0].mxu0
      %v199 = vadd.f32 %v77, %v198
      %v200 = vpop.f32.mrb[0].mxu0
      %v201 = vpop.f32.mrb[0].mxu0
      %v202 = vadd.f32 %v77, %v201
      %v203 = vpop.f32.mrb[0].mxu0
      %204 = vmatprep.mubr.bf16.mxu0 0
      %205 = vmatmul.mubr.bf16.gmra.mrb[0].mxu0 %v114
      %v206 = vpop.f32.mrb[0].mxu0
      %v207 = vadd.f32 %v77, %v206
      %v208 = vpop.f32.mrb[0].mxu0
      %v209 = vpop.f32.mrb[0].mxu0
      %v210 = vadd.f32 %v77, %v209
      %v211 = vpop.f32.mrb[0].mxu0
      %212 = vdwg.mxu0
      %v213 = vld [vmem:[%s3] sm:$0x1]
      %v214 = vld [vmem:[%s4] sm:$0x1]
      %v215 = vadd.f32 %v151, %v154
      %v216 = vadd.f32 %v215, %v159
      %v217 = vadd.f32 %v216, %v162
      %v218 = vadd.f32 %v217, %v167
      %v219 = vadd.f32 %v218, %v170
      %v220 = vadd.f32 %v219, %v175
      %v221 = vadd.f32 %v220, %v178
      %v222 = vadd.f32 %v221, %v183
      %v223 = vadd.f32 %v222, %v186
      %v224 = vadd.f32 %v223, %v191
      %v225 = vadd.f32 %v224, %v194
      %v226 = vadd.f32 %v225, %v199
      %v227 = vadd.f32 %v226, %v202
      %v228 = vadd.f32 %v227, %v207
      %v229 = vadd.f32 %v228, %v210
      %v230 = vrot.slane %v229, 4
      %v231 = vadd.f32 %v229, %v230
      %v232 = vrot.slane %v231, 2
      %v233 = vadd.f32 %v231, %v232
      %v234 = vrot.slane %v233, 1
      %v235 = vadd.f32 %v233, %v234
      %v236 = vmul.f32 %v235, 0.0078125
      %v237 = vsub.f32 %v151, %v236
      %v238 = vsub.f32 %v154, %v236
      %v239 = vsub.f32 %v159, %v236
      %v240 = vsub.f32 %v162, %v236
      %v241 = vsub.f32 %v167, %v236
      %v242 = vsub.f32 %v170, %v236
      %v243 = vsub.f32 %v175, %v236
      %v244 = vsub.f32 %v178, %v236
      %v245 = vsub.f32 %v183, %v236
      %v246 = vsub.f32 %v186, %v236
      %v247 = vsub.f32 %v191, %v236
      %v248 = vsub.f32 %v194, %v236
      %v249 = vsub.f32 %v199, %v236
      %v250 = vsub.f32 %v202, %v236
      %v251 = vsub.f32 %v207, %v236
      %v252 = vsub.f32 %v210, %v236
      %v253 = vmul.f32 %v237, %v237
      %v254 = vmul.f32 %v238, %v238
      %v255 = vmul.f32 %v239, %v239
      %v256 = vmul.f32 %v240, %v240
      %v257 = vmul.f32 %v241, %v241
      %v258 = vmul.f32 %v242, %v242
      %v259 = vmul.f32 %v243, %v243
      %v260 = vmul.f32 %v244, %v244
      %v261 = vmul.f32 %v245, %v245
      %v262 = vmul.f32 %v246, %v246
      %v263 = vmul.f32 %v247, %v247
      %v264 = vmul.f32 %v248, %v248
      %v265 = vmul.f32 %v249, %v249
      %v266 = vmul.f32 %v250, %v250
      %v267 = vmul.f32 %v251, %v251
      %v268 = vmul.f32 %v252, %v252
      %v269 = vadd.f32 %v253, %v254
      %v270 = vadd.f32 %v269, %v255
      %v271 = vadd.f32 %v270, %v256
      %v272 = vadd.f32 %v271, %v257
      %v273 = vadd.f32 %v272, %v258
      %v274 = vadd.f32 %v273, %v259
      %v275 = vadd.f32 %v274, %v260
      %v276 = vadd.f32 %v275, %v261
      %v277 = vadd.f32 %v276, %v262
      %v278 = vadd.f32 %v277, %v263
      %v279 = vadd.f32 %v278, %v264
      %v280 = vadd.f32 %v279, %v265
      %v281 = vadd.f32 %v280, %v266
      %v282 = vadd.f32 %v281, %v267
      %v283 = vadd.f32 %v282, %v268
      %v284 = vrot.slane %v283, 4
      %v285 = vadd.f32 %v283, %v284
      %v286 = vrot.slane %v285, 2
      %v287 = vadd.f32 %v285, %v286
      %v288 = vrot.slane %v287, 1
      %v289 = vadd.f32 %v287, %v288
      %v290 = vmul.f32 %v289, 0.0078125
      %v291 = vadd.f32 %v290, 1e-05
      %v292 = vrsqrt.pop %v291
      %v293 = vmul.f32 %v237, %v292
      %v294 = vmul.f32 %v238, %v292
      %v295 = vmul.f32 %v239, %v292
      %v296 = vmul.f32 %v240, %v292
      %v297 = vmul.f32 %v241, %v292
      %v298 = vmul.f32 %v242, %v292
      %v299 = vmul.f32 %v243, %v292
      %v300 = vmul.f32 %v244, %v292
      %v301 = vmul.f32 %v245, %v292
      %v302 = vmul.f32 %v246, %v292
      %v303 = vmul.f32 %v247, %v292
      %v304 = vmul.f32 %v248, %v292
      %v305 = vmul.f32 %v249, %v292
      %v306 = vmul.f32 %v250, %v292
      %v307 = vmul.f32 %v251, %v292
      %v308 = vmul.f32 %v252, %v292
      %v310 = vlaneseq
      %v311 = vshrl.u32 %v310, 7
      %v312 = vsub.s32 0, %v311
      %v313 = vrot.slane %v213, %v312
      %v315 = vmul.f32 %v293, %v313
      %v316 = vmul.f32 %v294, %v313
      %v317 = vmul.f32 %v295, %v313
      %v318 = vmul.f32 %v296, %v313
      %v319 = vmul.f32 %v297, %v313
      %v320 = vmul.f32 %v298, %v313
      %v321 = vmul.f32 %v299, %v313
      %v322 = vmul.f32 %v300, %v313
      %v323 = vmul.f32 %v301, %v313
      %v324 = vmul.f32 %v302, %v313
      %v325 = vmul.f32 %v303, %v313
      %v326 = vmul.f32 %v304, %v313
      %v327 = vmul.f32 %v305, %v313
      %v328 = vmul.f32 %v306, %v313
      %v329 = vmul.f32 %v307, %v313
      %v330 = vmul.f32 %v308, %v313
      %v332 = vlaneseq
      %v333 = vshrl.u32 %v332, 7
      %v334 = vsub.s32 0, %v333
      %v335 = vrot.slane %v214, %v334
      %v337 = vadd.f32 %v315, %v335
      %v338 = vadd.f32 %v316, %v335
      %v339 = vadd.f32 %v317, %v335
      %v340 = vadd.f32 %v318, %v335
      %v341 = vadd.f32 %v319, %v335
      %v342 = vadd.f32 %v320, %v335
      %v343 = vadd.f32 %v321, %v335
      %v344 = vadd.f32 %v322, %v335
      %v345 = vadd.f32 %v323, %v335
      %v346 = vadd.f32 %v324, %v335
      %v347 = vadd.f32 %v325, %v335
      %v348 = vadd.f32 %v326, %v335
      %v349 = vadd.f32 %v327, %v335
      %v350 = vadd.f32 %v328, %v335
      %v351 = vadd.f32 %v329, %v335
      %v352 = vadd.f32 %v330, %v335
      %v353 = vmax.f32 %v337, 0.0
      %v354 = vmax.f32 %v338, 0.0
      %v355 = vmax.f32 %v339, 0.0
      %v356 = vmax.f32 %v340, 0.0
      %v357 = vmax.f32 %v341, 0.0
      %v358 = vmax.f32 %v342, 0.0
      %v359 = vmax.f32 %v343, 0.0
      %v360 = vmax.f32 %v344, 0.0
      %v361 = vmax.f32 %v345, 0.0
      %v362 = vmax.f32 %v346, 0.0
      %v363 = vmax.f32 %v347, 0.0
      %v364 = vmax.f32 %v348, 0.0
      %v365 = vmax.f32 %v349, 0.0
      %v366 = vmax.f32 %v350, 0.0
      %v367 = vmax.f32 %v351, 0.0
      %v368 = vmax.f32 %v352, 0.0
      %v369 = vpack.c.bf16 %v354, %v353
      %v370 = vpack.c.bf16 %v356, %v355
      %v371 = vpack.c.bf16 %v358, %v357
      %v372 = vpack.c.bf16 %v360, %v359
      %v373 = vpack.c.bf16 %v362, %v361
      %v374 = vpack.c.bf16 %v364, %v363
      %v375 = vpack.c.bf16 %v366, %v365
      %v376 = vpack.c.bf16 %v368, %v367
      %377 = vst [vmem:[#allocation2] sm:$0xff] %v369
      %378 = vst [vmem:[#allocation2 + $0x8] sm:$0xff] %v370
      %379 = vst [vmem:[#allocation2 + $0x10] sm:$0xff] %v371
      %380 = vst [vmem:[#allocation2 + $0x18] sm:$0xff] %v372
      %381 = vst [vmem:[#allocation2 + $0x20] sm:$0xff] %v373
      %382 = vst [vmem:[#allocation2 + $0x28] sm:$0xff] %v374
      %383 = vst [vmem:[#allocation2 + $0x30] sm:$0xff] %v375
      %384 = vst [vmem:[#allocation2 + $0x38] sm:$0xff] %v376
      %v385 = vld [vmem:[%s10] sm:$0x1]
      %v387 = vlaneseq
      %v388 = vshrl.u32 %v387, 7
      %v389 = vsub.s32 0, %v388
      %v390 = vrot.slane %v385, %v389
      %392 = vst [vmem:[#allocation3] sm:$0xff] %v390
      %393 = vst [vmem:[#allocation3 + $0x8] sm:$0xff] %v390
      %394 = vst [vmem:[#allocation3 + $0x10] sm:$0xff] %v390
      %395 = vst [vmem:[#allocation3 + $0x18] sm:$0xff] %v390
      %396 = vst [vmem:[#allocation3 + $0x20] sm:$0xff] %v390
      %397 = vst [vmem:[#allocation3 + $0x28] sm:$0xff] %v390
      %398 = vst [vmem:[#allocation3 + $0x30] sm:$0xff] %v390
      %399 = vst [vmem:[#allocation3 + $0x38] sm:$0xff] %v390
      %400 = vst [vmem:[#allocation3 + $0x40] sm:$0xff] %v390
      %401 = vst [vmem:[#allocation3 + $0x48] sm:$0xff] %v390
      %402 = vst [vmem:[#allocation3 + $0x50] sm:$0xff] %v390
      %403 = vst [vmem:[#allocation3 + $0x58] sm:$0xff] %v390
      %404 = vst [vmem:[#allocation3 + $0x60] sm:$0xff] %v390
      %405 = vst [vmem:[#allocation3 + $0x68] sm:$0xff] %v390
      %406 = vst [vmem:[#allocation3 + $0x70] sm:$0xff] %v390
      %407 = vst [vmem:[#allocation3 + $0x78] sm:$0xff] %v390
    $region49: #{tpu_custom_call.1} parent=1 // pred_fallthru
      _
    %v408 = vld [vmem:[#allocation2] sm:$0xff]
    %v409 = vld [vmem:[#allocation2 + $0x8] sm:$0xff]
    %v410 = vld [vmem:[#allocation2 + $0x10] sm:$0xff]
    %v411 = vld [vmem:[#allocation2 + $0x18] sm:$0xff]
    %v412 = vld [vmem:[#allocation2 + $0x20] sm:$0xff]
    %v413 = vld [vmem:[#allocation2 + $0x28] sm:$0xff]
    %v414 = vld [vmem:[#allocation2 + $0x30] sm:$0xff]
    %v415 = vld [vmem:[#allocation2 + $0x38] sm:$0xff]
    %v416 = vld [vmem:[%s5] sm:$0xf]
    %v417 = vld [vmem:[%s5 + $0x4] sm:$0xf]
    %v418 = vld [vmem:[%s5 + $0x8] sm:$0xf]
    %v419 = vld [vmem:[%s5 + $0xc] sm:$0xf]
    %v420 = vld [vmem:[%s5 + $0x10] sm:$0xf]
    %v421 = vld [vmem:[%s5 + $0x14] sm:$0xf]
    %v422 = vld [vmem:[%s5 + $0x18] sm:$0xf]
    %v423 = vld [vmem:[%s5 + $0x1c] sm:$0xf]
    %v424 = vld [vmem:[%s5 + $0x20] sm:$0xf]
    %v425 = vld [vmem:[%s5 + $0x24] sm:$0xf]
    %v426 = vld [vmem:[%s5 + $0x28] sm:$0xf]
    %v427 = vld [vmem:[%s5 + $0x2c] sm:$0xf]
    %v428 = vld [vmem:[%s5 + $0x30] sm:$0xf]
    %v429 = vld [vmem:[%s5 + $0x34] sm:$0xf]
    %v430 = vld [vmem:[%s5 + $0x38] sm:$0xf]
    %v431 = vld [vmem:[%s5 + $0x3c] sm:$0xf]
    %v432 = vld [vmem:[%s6] sm:$0x1]
    %v434 = vlaneseq
    %v435 = vshrl.u32 %v434, 7
    %v436 = vsub.s32 0, %v435
    %v437 = vrot.slane %v432, %v436
    %v455 = vunpack.c.l.b16 %v416
    %v456 = vunpack.c.l.b16 %v417
    %v457 = vunpack.c.l.b16 %v418
    %v458 = vunpack.c.l.b16 %v419
    %v459 = vunpack.c.l.b16 %v420
    %v460 = vunpack.c.l.b16 %v421
    %v461 = vunpack.c.l.b16 %v422
    %v462 = vunpack.c.l.b16 %v423
    %v463 = vunpack.c.l.b16 %v424
    %v464 = vunpack.c.l.b16 %v425
    %v465 = vunpack.c.l.b16 %v426
    %v466 = vunpack.c.l.b16 %v427
    %v467 = vunpack.c.l.b16 %v428
    %v468 = vunpack.c.l.b16 %v429
    %v469 = vunpack.c.l.b16 %v430
    %v470 = vunpack.c.l.b16 %v431
    %v471 = vpack.c.b16 %v456, %v455
    %v472 = vpack.c.b16 %v458, %v457
    %v473 = vpack.c.b16 %v460, %v459
    %v474 = vpack.c.b16 %v462, %v461
    %v475 = vpack.c.b16 %v464, %v463
    %v476 = vpack.c.b16 %v466, %v465
    %v477 = vpack.c.b16 %v468, %v467
    %v478 = vpack.c.b16 %v470, %v469
    %487 = vmatprep.subr.bf16.mxu0 0
    %488 = vmatpush1.bf16.msra.mxu0 %v471
    %489 = vmatprep.subr.bf16.mxu0 0
    %490 = vmatpush1.bf16.msra.mxu0 %v472
    %491 = vmatprep.subr.bf16.mxu0 0
    %492 = vmatpush1.bf16.msra.mxu0 %v473
    %493 = vmatprep.subr.bf16.mxu0 0
    %494 = vmatpush1.bf16.msra.mxu0 %v474
    %495 = vmatprep.subr.bf16.mxu0 0
    %496 = vmatpush1.bf16.msra.mxu0 %v475
    %497 = vmatprep.subr.bf16.mxu0 0
    %498 = vmatpush1.bf16.msra.mxu0 %v476
    %499 = vmatprep.subr.bf16.mxu0 0
    %500 = vmatpush1.bf16.msra.mxu0 %v477
    %501 = vmatprep.subr.bf16.mxu0 0
    %502 = vmatpush1.bf16.msra.mxu0 %v478
    %503 = vmatprep.subr.bf16.mxu0 0
    %504 = vmatpush1.bf16.msra.mxu0 0
    %505 = vmatprep.subr.bf16.mxu0 0
    %506 = vmatpush1.bf16.msra.mxu0 0
    %507 = vmatprep.subr.bf16.mxu0 0
    %508 = vmatpush1.bf16.msra.mxu0 0
    %509 = vmatprep.subr.bf16.mxu0 0
    %510 = vmatpush1.bf16.msra.mxu0 0
    %511 = vmatprep.subr.bf16.mxu0 0
    %512 = vmatpush1.bf16.msra.mxu0 0
    %513 = vmatprep.subr.bf16.mxu0 0
    %514 = vmatpush1.bf16.msra.mxu0 0
    %515 = vmatprep.subr.bf16.mxu0 0
    %516 = vmatpush1.bf16.msra.mxu0 0
    %517 = vmatprep.subr.bf16.mxu0 0
    %518 = vmatpush1.bf16.msra.mxu0 0
    %519 = vmatprep.mubr.bf16.mxu0 0
    %520 = vmatmul.mubr.bf16.gmra.mrb[0].mxu0 %v408
    %v521 = vpop.f32.mrb[0].mxu0
    %v522 = vadd.f32 %v437, %v521
    %v523 = vpop.f32.mrb[0].mxu0
    %v524 = vpop.f32.mrb[0].mxu0
    %v525 = vadd.f32 %v437, %v524
    %v526 = vpop.f32.mrb[0].mxu0
    %527 = vmatprep.mubr.bf16.mxu0 0
    %528 = vmatmul.mubr.bf16.gmra.mrb[0].mxu0 %v409
    %v529 = vpop.f32.mrb[0].mxu0
    %v530 = vadd.f32 %v437, %v529
    %v531 = vpop.f32.mrb[0].mxu0
    %v532 = vpop.f32.mrb[0].mxu0
    %v533 = vadd.f32 %v437, %v532
    %v534 = vpop.f32.mrb[0].mxu0
    %535 = vmatprep.mubr.bf16.mxu0 0
    %536 = vmatmul.mubr.bf16.gmra.mrb[0].mxu0 %v410
    %v537 = vpop.f32.mrb[0].mxu0
    %v538 = vadd.f32 %v437, %v537
    %v539 = vpop.f32.mrb[0].mxu0
    %v540 = vpop.f32.mrb[0].mxu0
    %v541 = vadd.f32 %v437, %v540
    %v542 = vpop.f32.mrb[0].mxu0
    %543 = vmatprep.mubr.bf16.mxu0 0
    %544 = vmatmul.mubr.bf16.gmra.mrb[0].mxu0 %v411
    %v545 = vpop.f32.mrb[0].mxu0
    %v546 = vadd.f32 %v437, %v545
    %v547 = vpop.f32.mrb[0].mxu0
    %v548 = vpop.f32.mrb[0].mxu0
    %v549 = vadd.f32 %v437, %v548
    %v550 = vpop.f32.mrb[0].mxu0
    %551 = vmatprep.mubr.bf16.mxu0 0
    %552 = vmatmul.mubr.bf16.gmra.mrb[0].mxu0 %v412
    %v553 = vpop.f32.mrb[0].mxu0
    %v554 = vadd.f32 %v437, %v553
    %v555 = vpop.f32.mrb[0].mxu0
    %v556 = vpop.f32.mrb[0].mxu0
    %v557 = vadd.f32 %v437, %v556
    %v558 = vpop.f32.mrb[0].mxu0
    %559 = vmatprep.mubr.bf16.mxu0 0
    %560 = vmatmul.mubr.bf16.gmra.mrb[0].mxu0 %v413
    %v561 = vpop.f32.mrb[0].mxu0
    %v562 = vadd.f32 %v437, %v561
    %v563 = vpop.f32.mrb[0].mxu0
    %v564 = vpop.f32.mrb[0].mxu0
    %v565 = vadd.f32 %v437, %v564
    %v566 = vpop.f32.mrb[0].mxu0
    %567 = vmatprep.mubr.bf16.mxu0 0
    %568 = vmatmul.mubr.bf16.gmra.mrb[0].mxu0 %v414
    %v569 = vpop.f32.mrb[0].mxu0
    %v570 = vadd.f32 %v437, %v569
    %v571 = vpop.f32.mrb[0].mxu0
    %v572 = vpop.f32.mrb[0].mxu0
    %v573 = vadd.f32 %v437, %v572
    %v574 = vpop.f32.mrb[0].mxu0
    %575 = vmatprep.mubr.bf16.mxu0 0
    %576 = vmatmul.mubr.bf16.gmra.mrb[0].mxu0 %v415
    %v577 = vpop.f32.mrb[0].mxu0
    %v578 = vadd.f32 %v437, %v577
    %v579 = vpop.f32.mrb[0].mxu0
    %v580 = vpop.f32.mrb[0].mxu0
    %v581 = vadd.f32 %v437, %v580
    %v582 = vpop.f32.mrb[0].mxu0
    %583 = vdwg.mxu0
    %v584 = vld [vmem:[%s7] sm:$0x1]
    %v585 = vld [vmem:[%s8] sm:$0x1]
    %v586 = vadd.f32 %v522, %v525
    %v587 = vadd.f32 %v586, %v530
    %v588 = vadd.f32 %v587, %v533
    %v589 = vadd.f32 %v588, %v538
    %v590 = vadd.f32 %v589, %v541
    %v591 = vadd.f32 %v590, %v546
    %v592 = vadd.f32 %v591, %v549
    %v593 = vadd.f32 %v592, %v554
    %v594 = vadd.f32 %v593, %v557
    %v595 = vadd.f32 %v594, %v562
    %v596 = vadd.f32 %v595, %v565
    %v597 = vadd.f32 %v596, %v570
    %v598 = vadd.f32 %v597, %v573
    %v599 = vadd.f32 %v598, %v578
    %v600 = vadd.f32 %v599, %v581
    %v601 = vrot.slane %v600, 4
    %v602 = vadd.f32 %v600, %v601
    %v603 = vrot.slane %v602, 2
    %v604 = vadd.f32 %v602, %v603
    %v605 = vrot.slane %v604, 1
    %v606 = vadd.f32 %v604, %v605
    %v607 = vmul.f32 %v606, 0.0078125
    %v608 = vsub.f32 %v522, %v607
    %v609 = vsub.f32 %v525, %v607
    %v610 = vsub.f32 %v530, %v607
    %v611 = vsub.f32 %v533, %v607
    %v612 = vsub.f32 %v538, %v607
    %v613 = vsub.f32 %v541, %v607
    %v614 = vsub.f32 %v546, %v607
    %v615 = vsub.f32 %v549, %v607
    %v616 = vsub.f32 %v554, %v607
    %v617 = vsub.f32 %v557, %v607
    %v618 = vsub.f32 %v562, %v607
    %v619 = vsub.f32 %v565, %v607
    %v620 = vsub.f32 %v570, %v607
    %v621 = vsub.f32 %v573, %v607
    %v622 = vsub.f32 %v578, %v607
    %v623 = vsub.f32 %v581, %v607
    %v624 = vmul.f32 %v608, %v608
    %v625 = vmul.f32 %v609, %v609
    %v626 = vmul.f32 %v610, %v610
    %v627 = vmul.f32 %v611, %v611
    %v628 = vmul.f32 %v612, %v612
    %v629 = vmul.f32 %v613, %v613
    %v630 = vmul.f32 %v614, %v614
    %v631 = vmul.f32 %v615, %v615
    %v632 = vmul.f32 %v616, %v616
    %v633 = vmul.f32 %v617, %v617
    %v634 = vmul.f32 %v618, %v618
    %v635 = vmul.f32 %v619, %v619
    %v636 = vmul.f32 %v620, %v620
    %v637 = vmul.f32 %v621, %v621
    %v638 = vmul.f32 %v622, %v622
    %v639 = vmul.f32 %v623, %v623
    %v640 = vadd.f32 %v624, %v625
    %v641 = vadd.f32 %v640, %v626
    %v642 = vadd.f32 %v641, %v627
    %v643 = vadd.f32 %v642, %v628
    %v644 = vadd.f32 %v643, %v629
    %v645 = vadd.f32 %v644, %v630
    %v646 = vadd.f32 %v645, %v631
    %v647 = vadd.f32 %v646, %v632
    %v648 = vadd.f32 %v647, %v633
    %v649 = vadd.f32 %v648, %v634
    %v650 = vadd.f32 %v649, %v635
    %v651 = vadd.f32 %v650, %v636
    %v652 = vadd.f32 %v651, %v637
    %v653 = vadd.f32 %v652, %v638
    %v654 = vadd.f32 %v653, %v639
    %v655 = vrot.slane %v654, 4
    %v656 = vadd.f32 %v654, %v655
    %v657 = vrot.slane %v656, 2
    %v658 = vadd.f32 %v656, %v657
    %v659 = vrot.slane %v658, 1
    %v660 = vadd.f32 %v658, %v659
    %v661 = vmul.f32 %v660, 0.0078125
    %v662 = vadd.f32 %v661, 1e-05
    %v663 = vrsqrt.pop %v662
    %v664 = vmul.f32 %v608, %v663
    %v665 = vmul.f32 %v609, %v663
    %v666 = vmul.f32 %v610, %v663
    %v667 = vmul.f32 %v611, %v663
    %v668 = vmul.f32 %v612, %v663
    %v669 = vmul.f32 %v613, %v663
    %v670 = vmul.f32 %v614, %v663
    %v671 = vmul.f32 %v615, %v663
    %v672 = vmul.f32 %v616, %v663
    %v673 = vmul.f32 %v617, %v663
    %v674 = vmul.f32 %v618, %v663
    %v675 = vmul.f32 %v619, %v663
    %v676 = vmul.f32 %v620, %v663
    %v677 = vmul.f32 %v621, %v663
    %v678 = vmul.f32 %v622, %v663
    %v679 = vmul.f32 %v623, %v663
    %v681 = vlaneseq
    %v682 = vshrl.u32 %v681, 7
    %v683 = vsub.s32 0, %v682
    %v684 = vrot.slane %v584, %v683
    %v686 = vmul.f32 %v664, %v684
    %v687 = vmul.f32 %v665, %v684
    %v688 = vmul.f32 %v666, %v684
    %v689 = vmul.f32 %v667, %v684
    %v690 = vmul.f32 %v668, %v684
    %v691 = vmul.f32 %v669, %v684
    %v692 = vmul.f32 %v670, %v684
    %v693 = vmul.f32 %v671, %v684
    %v694 = vmul.f32 %v672, %v684
    %v695 = vmul.f32 %v673, %v684
    %v696 = vmul.f32 %v674, %v684
    %v697 = vmul.f32 %v675, %v684
    %v698 = vmul.f32 %v676, %v684
    %v699 = vmul.f32 %v677, %v684
    %v700 = vmul.f32 %v678, %v684
    %v701 = vmul.f32 %v679, %v684
    %v703 = vlaneseq
    %v704 = vshrl.u32 %v703, 7
    %v705 = vsub.s32 0, %v704
    %v706 = vrot.slane %v585, %v705
    %v708 = vadd.f32 %v686, %v706
    %v709 = vadd.f32 %v687, %v706
    %v710 = vadd.f32 %v688, %v706
    %v711 = vadd.f32 %v689, %v706
    %v712 = vadd.f32 %v690, %v706
    %v713 = vadd.f32 %v691, %v706
    %v714 = vadd.f32 %v692, %v706
    %v715 = vadd.f32 %v693, %v706
    %v716 = vadd.f32 %v694, %v706
    %v717 = vadd.f32 %v695, %v706
    %v718 = vadd.f32 %v696, %v706
    %v719 = vadd.f32 %v697, %v706
    %v720 = vadd.f32 %v698, %v706
    %v721 = vadd.f32 %v699, %v706
    %v722 = vadd.f32 %v700, %v706
    %v723 = vadd.f32 %v701, %v706
    %v724 = vmax.f32 %v708, 0.0
    %v725 = vmax.f32 %v709, 0.0
    %v726 = vmax.f32 %v710, 0.0
    %v727 = vmax.f32 %v711, 0.0
    %v728 = vmax.f32 %v712, 0.0
    %v729 = vmax.f32 %v713, 0.0
    %v730 = vmax.f32 %v714, 0.0
    %v731 = vmax.f32 %v715, 0.0
    %v732 = vmax.f32 %v716, 0.0
    %v733 = vmax.f32 %v717, 0.0
    %v734 = vmax.f32 %v718, 0.0
    %v735 = vmax.f32 %v719, 0.0
    %v736 = vmax.f32 %v720, 0.0
    %v737 = vmax.f32 %v721, 0.0
    %v738 = vmax.f32 %v722, 0.0
    %v739 = vmax.f32 %v723, 0.0
    %v740 = vpack.c.bf16 %v725, %v724
    %v741 = vpack.c.bf16 %v727, %v726
    %v742 = vpack.c.bf16 %v729, %v728
    %v743 = vpack.c.bf16 %v731, %v730
    %v744 = vpack.c.bf16 %v733, %v732
    %v745 = vpack.c.bf16 %v735, %v734
    %v746 = vpack.c.bf16 %v737, %v736
    %v747 = vpack.c.bf16 %v739, %v738
    %v748 = vld [vmem:[#allocation3] sm:$0xff]
    %v749 = vld [vmem:[#allocation3 + $0x8] sm:$0xff]
    %v750 = vld [vmem:[#allocation3 + $0x10] sm:$0xff]
    %v751 = vld [vmem:[#allocation3 + $0x18] sm:$0xff]
    %v752 = vld [vmem:[#allocation3 + $0x20] sm:$0xff]
    %v753 = vld [vmem:[#allocation3 + $0x28] sm:$0xff]
    %v754 = vld [vmem:[#allocation3 + $0x30] sm:$0xff]
    %v755 = vld [vmem:[#allocation3 + $0x38] sm:$0xff]
    %v756 = vld [vmem:[#allocation3 + $0x40] sm:$0xff]
    %v757 = vld [vmem:[#allocation3 + $0x48] sm:$0xff]
    %v758 = vld [vmem:[#allocation3 + $0x50] sm:$0xff]
    %v759 = vld [vmem:[#allocation3 + $0x58] sm:$0xff]
    %v760 = vld [vmem:[#allocation3 + $0x60] sm:$0xff]
    %v761 = vld [vmem:[#allocation3 + $0x68] sm:$0xff]
    %v762 = vld [vmem:[#allocation3 + $0x70] sm:$0xff]
    %v763 = vld [vmem:[#allocation3 + $0x78] sm:$0xff]
    %v764 = vld [vmem:[%s9] sm:$0xf]
    %v765 = vld [vmem:[%s9 + $0x4] sm:$0xf]
    %v766 = vld [vmem:[%s9 + $0x8] sm:$0xf]
    %v767 = vld [vmem:[%s9 + $0xc] sm:$0xf]
    %v768 = vld [vmem:[%s9 + $0x10] sm:$0xf]
    %v769 = vld [vmem:[%s9 + $0x14] sm:$0xf]
    %v770 = vld [vmem:[%s9 + $0x18] sm:$0xf]
    %v771 = vld [vmem:[%s9 + $0x1c] sm:$0xf]
    %v772 = vld [vmem:[%s9 + $0x20] sm:$0xf]
    %v773 = vld [vmem:[%s9 + $0x24] sm:$0xf]
    %v774 = vld [vmem:[%s9 + $0x28] sm:$0xf]
    %v775 = vld [vmem:[%s9 + $0x2c] sm:$0xf]
    %v776 = vld [vmem:[%s9 + $0x30] sm:$0xf]
    %v777 = vld [vmem:[%s9 + $0x34] sm:$0xf]
    %v778 = vld [vmem:[%s9 + $0x38] sm:$0xf]
    %v779 = vld [vmem:[%s9 + $0x3c] sm:$0xf]
    %v796 = vunpack.c.l.b16 %v764
    %v797 = vunpack.c.l.b16 %v765
    %v798 = vunpack.c.l.b16 %v766
    %v799 = vunpack.c.l.b16 %v767
    %v800 = vunpack.c.l.b16 %v768
    %v801 = vunpack.c.l.b16 %v769
    %v802 = vunpack.c.l.b16 %v770
    %v803 = vunpack.c.l.b16 %v771
    %v804 = vunpack.c.l.b16 %v772
    %v805 = vunpack.c.l.b16 %v773
    %v806 = vunpack.c.l.b16 %v774
    %v807 = vunpack.c.l.b16 %v775
    %v808 = vunpack.c.l.b16 %v776
    %v809 = vunpack.c.l.b16 %v777
    %v810 = vunpack.c.l.b16 %v778
    %v811 = vunpack.c.l.b16 %v779
    %v812 = vpack.c.b16 %v797, %v796
    %v813 = vpack.c.b16 %v799, %v798
    %v814 = vpack.c.b16 %v801, %v800
    %v815 = vpack.c.b16 %v803, %v802
    %v816 = vpack.c.b16 %v805, %v804
    %v817 = vpack.c.b16 %v807, %v806
    %v818 = vpack.c.b16 %v809, %v808
    %v819 = vpack.c.b16 %v811, %v810
    %828 = vmatprep.subr.bf16.mxu0 0
    %829 = vmatpush1.bf16.msra.mxu0 %v812
    %830 = vmatprep.subr.bf16.mxu0 0
    %831 = vmatpush1.bf16.msra.mxu0 %v813
    %832 = vmatprep.subr.bf16.mxu0 0
    %833 = vmatpush1.bf16.msra.mxu0 %v814
    %834 = vmatprep.subr.bf16.mxu0 0
    %835 = vmatpush1.bf16.msra.mxu0 %v815
    %836 = vmatprep.subr.bf16.mxu0 0
    %837 = vmatpush1.bf16.msra.mxu0 %v816
    %838 = vmatprep.subr.bf16.mxu0 0
    %839 = vmatpush1.bf16.msra.mxu0 %v817
    %840 = vmatprep.subr.bf16.mxu0 0
    %841 = vmatpush1.bf16.msra.mxu0 %v818
    %842 = vmatprep.subr.bf16.mxu0 0
    %843 = vmatpush1.bf16.msra.mxu0 %v819
    %844 = vmatprep.subr.bf16.mxu0 0
    %845 = vmatpush1.bf16.msra.mxu0 0
    %846 = vmatprep.subr.bf16.mxu0 0
    %847 = vmatpush1.bf16.msra.mxu0 0
    %848 = vmatprep.subr.bf16.mxu0 0
    %849 = vmatpush1.bf16.msra.mxu0 0
    %850 = vmatprep.subr.bf16.mxu0 0
    %851 = vmatpush1.bf16.msra.mxu0 0
    %852 = vmatprep.subr.bf16.mxu0 0
    %853 = vmatpush1.bf16.msra.mxu0 0
    %854 = vmatprep.subr.bf16.mxu0 0
    %855 = vmatpush1.bf16.msra.mxu0 0
    %856 = vmatprep.subr.bf16.mxu0 0
    %857 = vmatpush1.bf16.msra.mxu0 0
    %858 = vmatprep.subr.bf16.mxu0 0
    %859 = vmatpush1.bf16.msra.mxu0 0
    %860 = vmatprep.mubr.bf16.mxu0 0
    %861 = vmatmul.mubr.bf16.gmra.mrb[0].mxu0 %v740
    %v862 = vpop.f32.mrb[0].mxu0
    %v863 = vadd.f32 0.0, %v862
    %v864 = vpop.f32.mrb[0].mxu0
    %v865 = vpop.f32.mrb[0].mxu0
    %v866 = vadd.f32 0.0, %v865
    %v867 = vpop.f32.mrb[0].mxu0
    %868 = vmatprep.mubr.bf16.mxu0 0
    %869 = vmatmul.mubr.bf16.gmra.mrb[0].mxu0 %v741
    %v870 = vpop.f32.mrb[0].mxu0
    %v871 = vadd.f32 0.0, %v870
    %v872 = vpop.f32.mrb[0].mxu0
    %v873 = vpop.f32.mrb[0].mxu0
    %v874 = vadd.f32 0.0, %v873
    %v875 = vpop.f32.mrb[0].mxu0
    %876 = vmatprep.mubr.bf16.mxu0 0
    %877 = vmatmul.mubr.bf16.gmra.mrb[0].mxu0 %v742
    %v878 = vpop.f32.mrb[0].mxu0
    %v879 = vadd.f32 0.0, %v878
    %v880 = vpop.f32.mrb[0].mxu0
    %v881 = vpop.f32.mrb[0].mxu0
    %v882 = vadd.f32 0.0, %v881
    %v883 = vpop.f32.mrb[0].mxu0
    %884 = vmatprep.mubr.bf16.mxu0 0
    %885 = vmatmul.mubr.bf16.gmra.mrb[0].mxu0 %v743
    %v886 = vpop.f32.mrb[0].mxu0
    %v887 = vadd.f32 0.0, %v886
    %v888 = vpop.f32.mrb[0].mxu0
    %v889 = vpop.f32.mrb[0].mxu0
    %v890 = vadd.f32 0.0, %v889
    %v891 = vpop.f32.mrb[0].mxu0
    %892 = vmatprep.mubr.bf16.mxu0 0
    %893 = vmatmul.mubr.bf16.gmra.mrb[0].mxu0 %v744
    %v894 = vpop.f32.mrb[0].mxu0
    %v895 = vadd.f32 0.0, %v894
    %v896 = vpop.f32.mrb[0].mxu0
    %v897 = vpop.f32.mrb[0].mxu0
    %v898 = vadd.f32 0.0, %v897
    %v899 = vpop.f32.mrb[0].mxu0
    %900 = vmatprep.mubr.bf16.mxu0 0
    %901 = vmatmul.mubr.bf16.gmra.mrb[0].mxu0 %v745
    %v902 = vpop.f32.mrb[0].mxu0
    %v903 = vadd.f32 0.0, %v902
    %v904 = vpop.f32.mrb[0].mxu0
    %v905 = vpop.f32.mrb[0].mxu0
    %v906 = vadd.f32 0.0, %v905
    %v907 = vpop.f32.mrb[0].mxu0
    %908 = vmatprep.mubr.bf16.mxu0 0
    %909 = vmatmul.mubr.bf16.gmra.mrb[0].mxu0 %v746
    %v910 = vpop.f32.mrb[0].mxu0
    %v911 = vadd.f32 0.0, %v910
    %v912 = vpop.f32.mrb[0].mxu0
    %v913 = vpop.f32.mrb[0].mxu0
    %v914 = vadd.f32 0.0, %v913
    %v915 = vpop.f32.mrb[0].mxu0
    %916 = vmatprep.mubr.bf16.mxu0 0
    %917 = vmatmul.mubr.bf16.gmra.mrb[0].mxu0 %v747
    %v918 = vpop.f32.mrb[0].mxu0
    %v919 = vadd.f32 0.0, %v918
    %v920 = vpop.f32.mrb[0].mxu0
    %v921 = vpop.f32.mrb[0].mxu0
    %v922 = vadd.f32 0.0, %v921
    %v923 = vpop.f32.mrb[0].mxu0
    %924 = vdwg.mxu0
    %v925 = vadd.f32 %v748, %v863
    %v926 = vadd.f32 %v749, %v866
    %v927 = vadd.f32 %v750, %v871
    %v928 = vadd.f32 %v751, %v874
    %v929 = vadd.f32 %v752, %v879
    %v930 = vadd.f32 %v753, %v882
    %v931 = vadd.f32 %v754, %v887
    %v932 = vadd.f32 %v755, %v890
    %v933 = vadd.f32 %v756, %v895
    %v934 = vadd.f32 %v757, %v898
    %v935 = vadd.f32 %v758, %v903
    %v936 = vadd.f32 %v759, %v906
    %v937 = vadd.f32 %v760, %v911
    %v938 = vadd.f32 %v761, %v914
    %v939 = vadd.f32 %v762, %v919
    %v940 = vadd.f32 %v763, %v922
    %941 = vst [vmem:[#allocation3] sm:$0xff] %v925
    %942 = vst [vmem:[#allocation3 + $0x8] sm:$0xff] %v926
    %943 = vst [vmem:[#allocation3 + $0x10] sm:$0xff] %v927
    %944 = vst [vmem:[#allocation3 + $0x18] sm:$0xff] %v928
    %945 = vst [vmem:[#allocation3 + $0x20] sm:$0xff] %v929
    %946 = vst [vmem:[#allocation3 + $0x28] sm:$0xff] %v930
    %947 = vst [vmem:[#allocation3 + $0x30] sm:$0xff] %v931
    %948 = vst [vmem:[#allocation3 + $0x38] sm:$0xff] %v932
    %949 = vst [vmem:[#allocation3 + $0x40] sm:$0xff] %v933
    %950 = vst [vmem:[#allocation3 + $0x48] sm:$0xff] %v934
    %951 = vst [vmem:[#allocation3 + $0x50] sm:$0xff] %v935
    %952 = vst [vmem:[#allocation3 + $0x58] sm:$0xff] %v936
    %953 = vst [vmem:[#allocation3 + $0x60] sm:$0xff] %v937
    %954 = vst [vmem:[#allocation3 + $0x68] sm:$0xff] %v938
    %955 = vst [vmem:[#allocation3 + $0x70] sm:$0xff] %v939
    %956 = vst [vmem:[#allocation3 + $0x78] sm:$0xff] %v940
    // Predicated region
    $region50: #{tpu_custom_call.1} parent=1 // pred_check
      %p957 = pneg %p40
    $region51: #{tpu_custom_call.1} parent=1 // pred_check_branch
      %959 = sbr.rel (%p957) target = $region53
    $region52: #{tpu_custom_call.1} parent=1 // pred_region
      %v960 = vld [vmem:[#allocation3] sm:$0xff]
      %v961 = vld [vmem:[#allocation3 + $0x8] sm:$0xff]
      %v962 = vld [vmem:[#allocation3 + $0x10] sm:$0xff]
      %v963 = vld [vmem:[#allocation3 + $0x18] sm:$0xff]
      %v964 = vld [vmem:[#allocation3 + $0x20] sm:$0xff]
      %v965 = vld [vmem:[#allocation3 + $0x28] sm:$0xff]
      %v966 = vld [vmem:[#allocation3 + $0x30] sm:$0xff]
      %v967 = vld [vmem:[#allocation3 + $0x38] sm:$0xff]
      %v968 = vld [vmem:[#allocation3 + $0x40] sm:$0xff]
      %v969 = vld [vmem:[#allocation3 + $0x48] sm:$0xff]
      %v970 = vld [vmem:[#allocation3 + $0x50] sm:$0xff]
      %v971 = vld [vmem:[#allocation3 + $0x58] sm:$0xff]
      %v972 = vld [vmem:[#allocation3 + $0x60] sm:$0xff]
      %v973 = vld [vmem:[#allocation3 + $0x68] sm:$0xff]
      %v974 = vld [vmem:[#allocation3 + $0x70] sm:$0xff]
      %v975 = vld [vmem:[#allocation3 + $0x78] sm:$0xff]
      %976 = vst [vmem:[#allocation4] sm:$0xff] %v960
      %977 = vst [vmem:[#allocation4 + $0x8] sm:$0xff] %v961
      %978 = vst [vmem:[#allocation4 + $0x10] sm:$0xff] %v962
      %979 = vst [vmem:[#allocation4 + $0x18] sm:$0xff] %v963
      %980 = vst [vmem:[#allocation4 + $0x20] sm:$0xff] %v964
      %981 = vst [vmem:[#allocation4 + $0x28] sm:$0xff] %v965
      %982 = vst [vmem:[#allocation4 + $0x30] sm:$0xff] %v966
      %983 = vst [vmem:[#allocation4 + $0x38] sm:$0xff] %v967
      %984 = vst [vmem:[#allocation4 + $0x40] sm:$0xff] %v968
      %985 = vst [vmem:[#allocation4 + $0x48] sm:$0xff] %v969
      %986 = vst [vmem:[#allocation4 + $0x50] sm:$0xff] %v970
      %987 = vst [vmem:[#allocation4 + $0x58] sm:$0xff] %v971
      %988 = vst [vmem:[#allocation4 + $0x60] sm:$0xff] %v972
      %989 = vst [vmem:[#allocation4 + $0x68] sm:$0xff] %v973
      %990 = vst [vmem:[#allocation4 + $0x70] sm:$0xff] %v974
      %991 = vst [vmem:[#allocation4 + $0x78] sm:$0xff] %v975
    $region53: #{tpu_custom_call.1} parent=1 // pred_fallthru
      _
    // Predicated region
    $region54: #{tpu_custom_call.1} parent=1 // pred_check
      _
    $region55: #{tpu_custom_call.1} parent=1 // pred_check_branch
      %993 = sbr.rel (0) target = $region57
    $region56: #{tpu_custom_call.1} parent=1 // pred_region
      %s995 = ssub.s32 2048, 2048
      %996 = vsyncadd [#allocation5], %s995
      %s997 = sshll.u32 [#allocation4], 4
      %s998 = int_to_ptr.vmem [resolvable:$true] %s997
      %1003 = dma.vmem_to_hbm [thread:$0]  %s998, 2048, %s11, [#allocation5], 128, 128, 8
    $region57: #{tpu_custom_call.1} parent=1 // pred_fallthru
      _
    // Predicated region
    $region58: #{tpu_custom_call.1} parent=1 // pred_check
      _
    $region59: #{tpu_custom_call.1} parent=1 // pred_check_branch
      %1005 = sbr.rel (0) target = $region61
    $region60: #{tpu_custom_call.1} parent=1 // pred_region
      %1006 = dma.done [#allocation5], 2048
    $region61: #{tpu_custom_call.1} parent=1 // pred_fallthru
      _
    %1007 = vsyncpa [#allocation5], 1

</llo_original>
